<compile_context>
chip_gen: v6e
topology: v6e:2x2x1
jax: 0.10.0
libtpu: 0.0.40
codegen_flags: <defaults>
</compile_context>

<pallas_src>
import functools

import jax
import jax.numpy as jnp
from jax.experimental import pallas as pl
from jax.experimental.pallas import tpu as pltpu


def _relu(x):
    return jnp.maximum(x, 0.0)


ACTIVATION = _relu  # corresponds to the `activation_function` ctor argument

LANE = 128          # TPU lane width; hidden feature dims are padded to this
LAYER_DIMS = [(34, 50), (50, 100), (100, 100), (100, 50), (50, 50), (50, 48)]

_MIN_SPLIT_TILE = 256   # only force a 2-way batch split when each half has >= this many rows


def _round_up(n, m):
    return ((n + m - 1) // m) * m


def _pick_tile(batch, batch_tile):
    """Batch-tile selection: big tiles (amortize ~0.35us/step), 16-row rounding for bf16
    sublane packing, and >=2 grid steps on medium/large batches for 2-TC (v7x) sharding."""
    full = _round_up(batch, 16)
    tile = min(_round_up(batch_tile, 16), full)
    if full >= 2 * _MIN_SPLIT_TILE and 2 * tile > full:
        tile = _round_up((full + 1) // 2, 16)
    return max(tile, 16)


def _mlp_kernel(*refs):
    """Whole forward pass for one batch tile.

    refs = (x_ref, w1, b1, ..., w6, b6, o_ref).
      x_ref : f32 [tile, 34]   (cast to bf16 in-kernel; no pad pass in HBM)
      w*    : bf16 [K, N]      (K=34 for layer 1, N=48 for layer 6, 128 otherwise)
      b*    : f32  [1, N]
      o_ref : f32 [tile, 48]
    Dots accumulate in f32 on the MXU; bias-add + ReLU run on the f32 accumulator,
    then cast back to bf16 for the next layer's MXU operand.
    """
    x_ref = refs[0]
    o_ref = refs[-1]
    wb_refs = refs[1:-1]
    n_layers = len(wb_refs) // 2

    h = x_ref[...].astype(jnp.bfloat16)          # [tile, 34] bf16
    for li in range(n_layers):
        w = wb_refs[2 * li][...]                 # bf16 [K, N]
        b = wb_refs[2 * li + 1][...]             # f32  [1, N]
        acc = jnp.dot(h, w, preferred_element_type=jnp.float32) + b
        if li < n_layers - 1:
            h = ACTIVATION(acc).astype(jnp.bfloat16)
        else:
            o_ref[...] = acc.astype(o_ref.dtype)  # final layer: no activation


def prepare_params(params):
    """Pad/cast PyTorch-style params ONCE (cache and reuse across forward calls).

    params: list of (W [in, out] f32, b [out] f32), weights already transposed vs.
    PyTorch's [out, in] so the kernel computes x @ W directly.

    Hidden dims are zero-padded to 128 lanes; the first layer keeps its raw input dim
    (K=34) and the last layer keeps its raw output dim (N=48), so neither the input nor
    the output needs a lane-pad / slice pass in HBM.
    """
    n = len(params)
    flat = []
    for i, (W, b) in enumerate(params):
        fi, fo = W.shape
        ki = fi if i == 0 else LANE       # first layer: contract over raw 34 features
        no = fo if i == n - 1 else LANE   # last layer: emit raw 48 outputs
        Wp = jnp.zeros((ki, no), jnp.bfloat16).at[:fi, :fo].set(W.astype(jnp.bfloat16))
        bp = jnp.zeros((1, no), jnp.float32).at[0, :fo].set(b.astype(jnp.float32))
        flat.append(Wp)
        flat.append(bp)
    return tuple(flat)


@functools.partial(jax.jit, static_argnames=("batch_tile",))
def strain_to_stress_forward(x, prepared_params, *, batch_tile=2048):
    """x: [B, 34] float32. prepared_params: output of prepare_params(). Returns [B, 48] f32."""
    B, D_in = x.shape
    assert D_in == LAYER_DIMS[0][0]
    D_out = prepared_params[-2].shape[1]          # 48

    tile = _pick_tile(B, batch_tile)
    pad_B = _round_up(B, tile)
    grid = (pad_B // tile,)

    # Only the (cheap, usually empty) row tail is padded; no column pad / dtype pass.
    x_in = x if pad_B == B else jnp.pad(x, ((0, pad_B - B), (0, 0)))

    in_specs = [pl.BlockSpec((tile, D_in), lambda i: (i, 0))]
    for p in prepared_params:
        # Full-array blocks with constant index_map => params stay VMEM-resident.
        in_specs.append(pl.BlockSpec(p.shape, lambda i: (0, 0)))

    out = pl.pallas_call(
        _mlp_kernel,
        out_shape=jax.ShapeDtypeStruct((pad_B, D_out), jnp.float32),
        grid_spec=pltpu.PrefetchScalarGridSpec(
            num_scalar_prefetch=0,
            grid=grid,
            in_specs=in_specs,
            out_specs=pl.BlockSpec((tile, D_out), lambda i: (i, 0)),
        ),
        compiler_params=pltpu.CompilerParams(
            dimension_semantics=("parallel",),
            vmem_limit_bytes=48 * 1024 * 1024,
        ),
    )(x_in, *prepared_params)

    return out if pad_B == B else out[:B]


def init_params(key):
    """Deterministic init mimicking nn.Linear defaults: U(-1/sqrt(fan_in), 1/sqrt(fan_in)).

    Weights are stored transposed relative to PyTorch ([in, out] instead of [out, in]).
    """
    params = []
    for (fan_in, fan_out) in LAYER_DIMS:
        key, kw, kb = jax.random.split(key, 3)
        bound = 1.0 / jnp.sqrt(jnp.float32(fan_in))
        W = jax.random.uniform(kw, (fan_in, fan_out), jnp.float32, -bound, bound)
        b = jax.random.uniform(kb, (fan_out,), jnp.float32, -bound, bound)
        params.append((W, b))
    return params


def reference_forward(x, params):
    """Pure-JAX reference with the same bf16-operand / f32-accumulate numerics as the kernel."""
    n = len(params)
    h = x.astype(jnp.bfloat16)
    for i, (W, b) in enumerate(params):
        acc = jnp.dot(h, W.astype(jnp.bfloat16),
                      preferred_element_type=jnp.float32) + b.astype(jnp.float32)
        if i < n - 1:
            h = ACTIVATION(acc).astype(jnp.bfloat16)
        else:
            return acc


if __name__ == "__main__":
    key = jax.random.PRNGKey(0)
    key, kx = jax.random.split(key)

    B = 16  # small batch; no divisibility requirement on the tile size
    x = jax.random.normal(kx, (B, 34), jnp.float32)

    params = init_params(key)
    prepared = prepare_params(params)   # padded/cast once, reused across calls

    out = strain_to_stress_forward(x, prepared)
    out = jax.block_until_ready(out)

    ref = reference_forward(x, params)
    assert out.shape == (B, 48), out.shape
    assert jnp.allclose(out, ref, atol=2e-2, rtol=2e-2), "mismatch vs reference"

    print("KERNEL_OK")
</pallas_src>

<mosaic_0001>
module attributes {stable_mosaic.version = 11 : i64} {
  func.func @_mlp_kernel(%arg0: i32, %arg1: memref<16x34xf32, #tpu.memory_space<vmem>>, %arg2: memref<34x128xbf16, #tpu.memory_space<vmem>>, %arg3: memref<1x128xf32, #tpu.memory_space<vmem>>, %arg4: memref<128x128xbf16, #tpu.memory_space<vmem>>, %arg5: memref<1x128xf32, #tpu.memory_space<vmem>>, %arg6: memref<128x128xbf16, #tpu.memory_space<vmem>>, %arg7: memref<1x128xf32, #tpu.memory_space<vmem>>, %arg8: memref<128x128xbf16, #tpu.memory_space<vmem>>, %arg9: memref<1x128xf32, #tpu.memory_space<vmem>>, %arg10: memref<128x128xbf16, #tpu.memory_space<vmem>>, %arg11: memref<1x128xf32, #tpu.memory_space<vmem>>, %arg12: memref<128x48xbf16, #tpu.memory_space<vmem>>, %arg13: memref<1x48xf32, #tpu.memory_space<vmem>>, %arg14: memref<16x48xf32, #tpu.memory_space<vmem>>) attributes {dimension_semantics = [#tpu.dimension_semantics<parallel>], iteration_bounds = array<i64: 1>, scalar_prefetch = 0 : i64, scratch_operands = 0 : i64, tpu.core_type = #tpu.core_type<tc>, window_params = [{transform_indices = @transform_0, window_bounds = array<i64: 16, 34>}, {pipeline_mode = #tpu.pipeline_mode<synchronous>, transform_indices = @transform_1, window_bounds = array<i64: 34, 128>}, {pipeline_mode = #tpu.pipeline_mode<synchronous>, transform_indices = @transform_2, window_bounds = array<i64: 1, 128>}, {pipeline_mode = #tpu.pipeline_mode<synchronous>, transform_indices = @transform_3, window_bounds = array<i64: 128, 128>}, {pipeline_mode = #tpu.pipeline_mode<synchronous>, transform_indices = @transform_4, window_bounds = array<i64: 1, 128>}, {pipeline_mode = #tpu.pipeline_mode<synchronous>, transform_indices = @transform_5, window_bounds = array<i64: 128, 128>}, {pipeline_mode = #tpu.pipeline_mode<synchronous>, transform_indices = @transform_6, window_bounds = array<i64: 1, 128>}, {pipeline_mode = #tpu.pipeline_mode<synchronous>, transform_indices = @transform_7, window_bounds = array<i64: 128, 128>}, {pipeline_mode = #tpu.pipeline_mode<synchronous>, transform_indices = @transform_8, window_bounds = array<i64: 1, 128>}, {pipeline_mode = #tpu.pipeline_mode<synchronous>, transform_indices = @transform_9, window_bounds = array<i64: 128, 128>}, {pipeline_mode = #tpu.pipeline_mode<synchronous>, transform_indices = @transform_10, window_bounds = array<i64: 1, 128>}, {pipeline_mode = #tpu.pipeline_mode<synchronous>, transform_indices = @transform_11, window_bounds = array<i64: 128, 48>}, {pipeline_mode = #tpu.pipeline_mode<synchronous>, transform_indices = @transform_12, window_bounds = array<i64: 1, 48>}, {transform_indices = @transform_13, window_bounds = array<i64: 16, 48>}]} {
    %c0 = arith.constant 0 : index
    %c0_0 = arith.constant 0 : index
    %0 = vector.load %arg1[%c0, %c0_0] : memref<16x34xf32, #tpu.memory_space<vmem>>, vector<16x34xf32>
    %1 = arith.truncf %0 : vector<16x34xf32> to vector<16x34xbf16>
    %c0_1 = arith.constant 0 : index
    %c0_2 = arith.constant 0 : index
    %2 = vector.load %arg2[%c0_1, %c0_2] : memref<34x128xbf16, #tpu.memory_space<vmem>>, vector<34x128xbf16>
    %c0_3 = arith.constant 0 : index
    %c0_4 = arith.constant 0 : index
    %3 = vector.load %arg3[%c0_3, %c0_4] : memref<1x128xf32, #tpu.memory_space<vmem>>, vector<1x128xf32>
    %cst = arith.constant dense<0.000000e+00> : vector<16x128xf32>
    %4 = tpu.matmul %1, %2, %cst {dimension_numbers = #tpu.dot_dimension_numbers<[1], [0], [0], [1], [0, 0, 1, 1], [], []>} : vector<16x34xbf16>, vector<34x128xbf16>, vector<16x128xf32> -> vector<16x128xf32>
    %5 = vector.broadcast %3 : vector<1x128xf32> to vector<16x128xf32>
    %6 = arith.addf %4, %5 : vector<16x128xf32>
    %cst_5 = arith.constant 0.000000e+00 : f32
    %7 = vector.broadcast %cst_5 : f32 to vector<16x128xf32>
    %8 = arith.maximumf %6, %7 : vector<16x128xf32>
    %9 = arith.truncf %8 : vector<16x128xf32> to vector<16x128xbf16>
    %c0_6 = arith.constant 0 : index
    %c0_7 = arith.constant 0 : index
    %10 = vector.load %arg4[%c0_6, %c0_7] : memref<128x128xbf16, #tpu.memory_space<vmem>>, vector<128x128xbf16>
    %c0_8 = arith.constant 0 : index
    %c0_9 = arith.constant 0 : index
    %11 = vector.load %arg5[%c0_8, %c0_9] : memref<1x128xf32, #tpu.memory_space<vmem>>, vector<1x128xf32>
    %cst_10 = arith.constant dense<0.000000e+00> : vector<16x128xf32>
    %12 = tpu.matmul %9, %10, %cst_10 {dimension_numbers = #tpu.dot_dimension_numbers<[1], [0], [0], [1], [0, 0, 1, 1], [], []>} : vector<16x128xbf16>, vector<128x128xbf16>, vector<16x128xf32> -> vector<16x128xf32>
    %13 = vector.broadcast %11 : vector<1x128xf32> to vector<16x128xf32>
    %14 = arith.addf %12, %13 : vector<16x128xf32>
    %cst_11 = arith.constant 0.000000e+00 : f32
    %15 = vector.broadcast %cst_11 : f32 to vector<16x128xf32>
    %16 = arith.maximumf %14, %15 : vector<16x128xf32>
    %17 = arith.truncf %16 : vector<16x128xf32> to vector<16x128xbf16>
    %c0_12 = arith.constant 0 : index
    %c0_13 = arith.constant 0 : index
    %18 = vector.load %arg6[%c0_12, %c0_13] : memref<128x128xbf16, #tpu.memory_space<vmem>>, vector<128x128xbf16>
    %c0_14 = arith.constant 0 : index
    %c0_15 = arith.constant 0 : index
    %19 = vector.load %arg7[%c0_14, %c0_15] : memref<1x128xf32, #tpu.memory_space<vmem>>, vector<1x128xf32>
    %cst_16 = arith.constant dense<0.000000e+00> : vector<16x128xf32>
    %20 = tpu.matmul %17, %18, %cst_16 {dimension_numbers = #tpu.dot_dimension_numbers<[1], [0], [0], [1], [0, 0, 1, 1], [], []>} : vector<16x128xbf16>, vector<128x128xbf16>, vector<16x128xf32> -> vector<16x128xf32>
    %21 = vector.broadcast %19 : vector<1x128xf32> to vector<16x128xf32>
    %22 = arith.addf %20, %21 : vector<16x128xf32>
    %cst_17 = arith.constant 0.000000e+00 : f32
    %23 = vector.broadcast %cst_17 : f32 to vector<16x128xf32>
    %24 = arith.maximumf %22, %23 : vector<16x128xf32>
    %25 = arith.truncf %24 : vector<16x128xf32> to vector<16x128xbf16>
    %c0_18 = arith.constant 0 : index
    %c0_19 = arith.constant 0 : index
    %26 = vector.load %arg8[%c0_18, %c0_19] : memref<128x128xbf16, #tpu.memory_space<vmem>>, vector<128x128xbf16>
    %c0_20 = arith.constant 0 : index
    %c0_21 = arith.constant 0 : index
    %27 = vector.load %arg9[%c0_20, %c0_21] : memref<1x128xf32, #tpu.memory_space<vmem>>, vector<1x128xf32>
    %cst_22 = arith.constant dense<0.000000e+00> : vector<16x128xf32>
    %28 = tpu.matmul %25, %26, %cst_22 {dimension_numbers = #tpu.dot_dimension_numbers<[1], [0], [0], [1], [0, 0, 1, 1], [], []>} : vector<16x128xbf16>, vector<128x128xbf16>, vector<16x128xf32> -> vector<16x128xf32>
    %29 = vector.broadcast %27 : vector<1x128xf32> to vector<16x128xf32>
    %30 = arith.addf %28, %29 : vector<16x128xf32>
    %cst_23 = arith.constant 0.000000e+00 : f32
    %31 = vector.broadcast %cst_23 : f32 to vector<16x128xf32>
    %32 = arith.maximumf %30, %31 : vector<16x128xf32>
    %33 = arith.truncf %32 : vector<16x128xf32> to vector<16x128xbf16>
    %c0_24 = arith.constant 0 : index
    %c0_25 = arith.constant 0 : index
    %34 = vector.load %arg10[%c0_24, %c0_25] : memref<128x128xbf16, #tpu.memory_space<vmem>>, vector<128x128xbf16>
    %c0_26 = arith.constant 0 : index
    %c0_27 = arith.constant 0 : index
    %35 = vector.load %arg11[%c0_26, %c0_27] : memref<1x128xf32, #tpu.memory_space<vmem>>, vector<1x128xf32>
    %cst_28 = arith.constant dense<0.000000e+00> : vector<16x128xf32>
    %36 = tpu.matmul %33, %34, %cst_28 {dimension_numbers = #tpu.dot_dimension_numbers<[1], [0], [0], [1], [0, 0, 1, 1], [], []>} : vector<16x128xbf16>, vector<128x128xbf16>, vector<16x128xf32> -> vector<16x128xf32>
    %37 = vector.broadcast %35 : vector<1x128xf32> to vector<16x128xf32>
    %38 = arith.addf %36, %37 : vector<16x128xf32>
    %cst_29 = arith.constant 0.000000e+00 : f32
    %39 = vector.broadcast %cst_29 : f32 to vector<16x128xf32>
    %40 = arith.maximumf %38, %39 : vector<16x128xf32>
    %41 = arith.truncf %40 : vector<16x128xf32> to vector<16x128xbf16>
    %c0_30 = arith.constant 0 : index
    %c0_31 = arith.constant 0 : index
    %42 = vector.load %arg12[%c0_30, %c0_31] : memref<128x48xbf16, #tpu.memory_space<vmem>>, vector<128x48xbf16>
    %c0_32 = arith.constant 0 : index
    %c0_33 = arith.constant 0 : index
    %43 = vector.load %arg13[%c0_32, %c0_33] : memref<1x48xf32, #tpu.memory_space<vmem>>, vector<1x48xf32>
    %cst_34 = arith.constant dense<0.000000e+00> : vector<16x48xf32>
    %44 = tpu.matmul %41, %42, %cst_34 {dimension_numbers = #tpu.dot_dimension_numbers<[1], [0], [0], [1], [0, 0, 1, 1], [], []>} : vector<16x128xbf16>, vector<128x48xbf16>, vector<16x48xf32> -> vector<16x48xf32>
    %45 = vector.broadcast %43 : vector<1x48xf32> to vector<16x48xf32>
    %46 = arith.addf %44, %45 : vector<16x48xf32>
    %c0_35 = arith.constant 0 : index
    %c0_36 = arith.constant 0 : index
    %47 = vector.load %arg14[%c0_35, %c0_36] : memref<16x48xf32, #tpu.memory_space<vmem>>, vector<16x48xf32>
    tpu.vector_store %arg14[%c0_35, %c0_36], %46 {strides = array<i32>} : memref<16x48xf32, #tpu.memory_space<vmem>>, vector<16x48xf32>,
    return
  }
  func.func @transform_0(%arg0: i32) -> (i32, i32) {
    %c0_i32 = arith.constant 0 : i32
    %c0_i32_0 = arith.constant 0 : i32
    return %arg0, %c0_i32 : i32, i32
  }
  func.func @transform_1(%arg0: i32) -> (i32, i32) {
    %c0_i32 = arith.constant 0 : i32
    %c0_i32_0 = arith.constant 0 : i32
    %c0_i32_1 = arith.constant 0 : i32
    return %c0_i32, %c0_i32_0 : i32, i32
  }
  func.func @transform_2(%arg0: i32) -> (i32, i32) {
    %c0_i32 = arith.constant 0 : i32
    %c0_i32_0 = arith.constant 0 : i32
    %c0_i32_1 = arith.constant 0 : i32
    return %c0_i32, %c0_i32_0 : i32, i32
  }
  func.func @transform_3(%arg0: i32) -> (i32, i32) {
    %c0_i32 = arith.constant 0 : i32
    %c0_i32_0 = arith.constant 0 : i32
    %c0_i32_1 = arith.constant 0 : i32
    return %c0_i32, %c0_i32_0 : i32, i32
  }
  func.func @transform_4(%arg0: i32) -> (i32, i32) {
    %c0_i32 = arith.constant 0 : i32
    %c0_i32_0 = arith.constant 0 : i32
    %c0_i32_1 = arith.constant 0 : i32
    return %c0_i32, %c0_i32_0 : i32, i32
  }
  func.func @transform_5(%arg0: i32) -> (i32, i32) {
    %c0_i32 = arith.constant 0 : i32
    %c0_i32_0 = arith.constant 0 : i32
    %c0_i32_1 = arith.constant 0 : i32
    return %c0_i32, %c0_i32_0 : i32, i32
  }
  func.func @transform_6(%arg0: i32) -> (i32, i32) {
    %c0_i32 = arith.constant 0 : i32
    %c0_i32_0 = arith.constant 0 : i32
    %c0_i32_1 = arith.constant 0 : i32
    return %c0_i32, %c0_i32_0 : i32, i32
  }
  func.func @transform_7(%arg0: i32) -> (i32, i32) {
    %c0_i32 = arith.constant 0 : i32
    %c0_i32_0 = arith.constant 0 : i32
    %c0_i32_1 = arith.constant 0 : i32
    return %c0_i32, %c0_i32_0 : i32, i32
  }
  func.func @transform_8(%arg0: i32) -> (i32, i32) {
    %c0_i32 = arith.constant 0 : i32
    %c0_i32_0 = arith.constant 0 : i32
    %c0_i32_1 = arith.constant 0 : i32
    return %c0_i32, %c0_i32_0 : i32, i32
  }
  func.func @transform_9(%arg0: i32) -> (i32, i32) {
    %c0_i32 = arith.constant 0 : i32
    %c0_i32_0 = arith.constant 0 : i32
    %c0_i32_1 = arith.constant 0 : i32
    return %c0_i32, %c0_i32_0 : i32, i32
  }
  func.func @transform_10(%arg0: i32) -> (i32, i32) {
    %c0_i32 = arith.constant 0 : i32
    %c0_i32_0 = arith.constant 0 : i32
    %c0_i32_1 = arith.constant 0 : i32
    return %c0_i32, %c0_i32_0 : i32, i32
  }
  func.func @transform_11(%arg0: i32) -> (i32, i32) {
    %c0_i32 = arith.constant 0 : i32
    %c0_i32_0 = arith.constant 0 : i32
    %c0_i32_1 = arith.constant 0 : i32
    return %c0_i32, %c0_i32_0 : i32, i32
  }
  func.func @transform_12(%arg0: i32) -> (i32, i32) {
    %c0_i32 = arith.constant 0 : i32
    %c0_i32_0 = arith.constant 0 : i32
    %c0_i32_1 = arith.constant 0 : i32
    return %c0_i32, %c0_i32_0 : i32, i32
  }
  func.func @transform_13(%arg0: i32) -> (i32, i32) {
    %c0_i32 = arith.constant 0 : i32
    %c0_i32_0 = arith.constant 0 : i32
    return %arg0, %c0_i32 : i32, i32
  }
}

</mosaic_0001>

<llo_original>
// kernel: strain_to_stress_forward.1
$region0: #{strain_to_stress_forward.1}
  #allocation0 [shape = 'u32[]', space=smem, size = 0x4, offset = 0x4, fixed_abs, tag = 'smem constant byte address 0x4 - core index']
  #allocation1 [shape = 'u32[144,128]{1,0:T(1,128)}', space=vmem, size = 0x12000, scoped, tag = 'internal scratch']
  %s0 = inlined_call_operand.hbm [shape: f32[16,34], index: 0, kind: input, shape index: {}]
  %s1 = inlined_call_operand.vmem [shape: bf16[34,128], index: 1, kind: input, shape index: {}]
  %s2 = inlined_call_operand.vmem [shape: f32[1,128], index: 2, kind: input, shape index: {}]
  %s3 = inlined_call_operand.vmem [shape: bf16[128,128], index: 3, kind: input, shape index: {}]
  %s4 = inlined_call_operand.vmem [shape: f32[1,128], index: 4, kind: input, shape index: {}]
  %s5 = inlined_call_operand.hbm [shape: bf16[128,128], index: 5, kind: input, shape index: {}]
  %s6 = inlined_call_operand.vmem [shape: f32[1,128], index: 6, kind: input, shape index: {}]
  %s7 = inlined_call_operand.hbm [shape: bf16[128,128], index: 7, kind: input, shape index: {}]
  %s8 = inlined_call_operand.vmem [shape: f32[1,128], index: 8, kind: input, shape index: {}]
  %s9 = inlined_call_operand.hbm [shape: bf16[128,128], index: 9, kind: input, shape index: {}]
  %s10 = inlined_call_operand.vmem [shape: f32[1,128], index: 10, kind: input, shape index: {}]
  %s11 = inlined_call_operand.vmem [shape: bf16[128,48], index: 11, kind: input, shape index: {}]
  %s12 = inlined_call_operand.vmem [shape: f32[1,48], index: 12, kind: input, shape index: {}]
  %s13 = inlined_call_operand.hbm [shape: f32[16,48], index: 13, kind: output, shape index: {}]
  %s14 = sld [smem:[#allocation0]]
  $region78: #{strain_to_stress_forward.1} parent=0
    _
  %s16 = ssub.s32 1, %s14
  %s17 = scalar_select 0, %s16, %s14
  $region1: #{strain_to_stress_forward.1} parent=0
    #allocation2 [shape = 'u8[8192]{0}', space=vmem, size = 0x2000, scoped, tag = 'input window, operand 0, single buffered']
    #allocation3 [shape = 's32[1]{0}', space=sflag, size = 0x4, scoped, tag = 'scoped memory for strain_to_stress_forward.1']
    #allocation4 [shape = 's32[1]{0}', space=sflag, size = 0x4, scoped, tag = 'scoped memory for strain_to_stress_forward.1']
    #allocation5 [shape = 'u8[32768]{0}', space=vmem, size = 0x8000, scoped, tag = 'input window, operand 5, single buffered']
    #allocation6 [shape = 's32[1]{0}', space=sflag, size = 0x4, scoped, tag = 'scoped memory for strain_to_stress_forward.1']
    #allocation7 [shape = 'u8[32768]{0}', space=vmem, size = 0x8000, scoped, tag = 'input window, operand 7, single buffered']
    #allocation8 [shape = 'u8[32768]{0}', space=vmem, size = 0x8000, scoped, tag = 'input window, operand 9, single buffered']
    #allocation9 [shape = 's32[1]{0}', space=sflag, size = 0x4, scoped, tag = 'scoped memory for strain_to_stress_forward.1']
    #allocation10 [shape = 'u8[8192]{0}', space=vmem, size = 0x2000, scoped, tag = 'output window, operand 0, single buffered']
    %18 = vsyncpa [#allocation3], 0
    %19 = vsyncpa [#allocation6], 0
    %20 = vsyncpa [#allocation9], 0
    %21 = vsyncpa [#allocation4], 0
    // Predicated region
    $region2: #{strain_to_stress_forward.1} parent=1 // pred_check
      _
    $region3: #{strain_to_stress_forward.1} parent=1 // pred_check_branch
      %23 = sbr.rel (0) target = $region5
    $region4: #{strain_to_stress_forward.1} parent=1 // pred_region
      %s25 = ssub.s32 256, 256
      %26 = vsyncadd [#allocation3], %s25
      %s27 = sshll.u32 [#allocation2], 4
      %s28 = int_to_ptr.vmem [resolvable:$true] %s27
      %33 = dma.hbm_to_vmem [thread:$0]  %s0, 256, %s28, [#allocation3], 128, 128, 8
    $region5: #{strain_to_stress_forward.1} parent=1 // pred_fallthru
      _
    // Predicated region
    $region6: #{strain_to_stress_forward.1} parent=1 // pred_check
      _
    $region7: #{strain_to_stress_forward.1} parent=1 // pred_check_branch
      %35 = sbr.rel (0) target = $region9
    $region8: #{strain_to_stress_forward.1} parent=1 // pred_region
      _
    $region9: #{strain_to_stress_forward.1} parent=1 // pred_fallthru
      _
    // Predicated region
    $region10: #{strain_to_stress_forward.1} parent=1 // pred_check
      _
    $region11: #{strain_to_stress_forward.1} parent=1 // pred_check_branch
      %37 = sbr.rel (0) target = $region13
    $region12: #{strain_to_stress_forward.1} parent=1 // pred_region
      _
    $region13: #{strain_to_stress_forward.1} parent=1 // pred_fallthru
      _
    // Predicated region
    $region14: #{strain_to_stress_forward.1} parent=1 // pred_check
      _
    $region15: #{strain_to_stress_forward.1} parent=1 // pred_check_branch
      %39 = sbr.rel (0) target = $region17
    $region16: #{strain_to_stress_forward.1} parent=1 // pred_region
      _
    $region17: #{strain_to_stress_forward.1} parent=1 // pred_fallthru
      _
    // Predicated region
    $region18: #{strain_to_stress_forward.1} parent=1 // pred_check
      _
    $region19: #{strain_to_stress_forward.1} parent=1 // pred_check_branch
      %41 = sbr.rel (0) target = $region21
    $region20: #{strain_to_stress_forward.1} parent=1 // pred_region
      _
    $region21: #{strain_to_stress_forward.1} parent=1 // pred_fallthru
      _
    // Predicated region
    $region22: #{strain_to_stress_forward.1} parent=1 // pred_check
      _
    $region23: #{strain_to_stress_forward.1} parent=1 // pred_check_branch
      %43 = sbr.rel (0) target = $region25
    $region24: #{strain_to_stress_forward.1} parent=1 // pred_region
      %s45 = ssub.s32 1024, 1024
      %46 = vsyncadd [#allocation6], %s45
      %s47 = sshll.u32 [#allocation5], 4
      %s48 = int_to_ptr.vmem [resolvable:$true] %s47
      %53 = dma.hbm_to_vmem [thread:$0]  %s5, 1024, %s48, [#allocation6], 64, 64, 4
    $region25: #{strain_to_stress_forward.1} parent=1 // pred_fallthru
      _
    // Predicated region
    $region26: #{strain_to_stress_forward.1} parent=1 // pred_check
      _
    $region27: #{strain_to_stress_forward.1} parent=1 // pred_check_branch
      %55 = sbr.rel (0) target = $region29
    $region28: #{strain_to_stress_forward.1} parent=1 // pred_region
      _
    $region29: #{strain_to_stress_forward.1} parent=1 // pred_fallthru
      _
    // Predicated region
    $region30: #{strain_to_stress_forward.1} parent=1 // pred_check
      _
    $region31: #{strain_to_stress_forward.1} parent=1 // pred_check_branch
      %57 = sbr.rel (0) target = $region33
    $region32: #{strain_to_stress_forward.1} parent=1 // pred_region
      %s59 = ssub.s32 1024, 1024
      %60 = vsyncadd [#allocation6], %s59
      %s61 = sshll.u32 [#allocation7], 4
      %s62 = int_to_ptr.vmem [resolvable:$true] %s61
      %67 = dma.hbm_to_vmem [thread:$0]  %s7, 1024, %s62, [#allocation6], 64, 64, 4
    $region33: #{strain_to_stress_forward.1} parent=1 // pred_fallthru
      _
    // Predicated region
    $region34: #{strain_to_stress_forward.1} parent=1 // pred_check
      _
    $region35: #{strain_to_stress_forward.1} parent=1 // pred_check_branch
      %69 = sbr.rel (0) target = $region37
    $region36: #{strain_to_stress_forward.1} parent=1 // pred_region
      _
    $region37: #{strain_to_stress_forward.1} parent=1 // pred_fallthru
      _
    // Predicated region
    $region38: #{strain_to_stress_forward.1} parent=1 // pred_check
      _
    $region39: #{strain_to_stress_forward.1} parent=1 // pred_check_branch
      %71 = sbr.rel (0) target = $region41
    $region40: #{strain_to_stress_forward.1} parent=1 // pred_region
      %s73 = ssub.s32 1024, 1024
      %74 = vsyncadd [#allocation9], %s73
      %s75 = sshll.u32 [#allocation8], 4
      %s76 = int_to_ptr.vmem [resolvable:$true] %s75
      %81 = dma.hbm_to_vmem [thread:$0]  %s9, 1024, %s76, [#allocation9], 64, 64, 4
    $region41: #{strain_to_stress_forward.1} parent=1 // pred_fallthru
      _
    // Predicated region
    $region42: #{strain_to_stress_forward.1} parent=1 // pred_check
      _
    $region43: #{strain_to_stress_forward.1} parent=1 // pred_check_branch
      %83 = sbr.rel (0) target = $region45
    $region44: #{strain_to_stress_forward.1} parent=1 // pred_region
      _
    $region45: #{strain_to_stress_forward.1} parent=1 // pred_fallthru
      _
    // Predicated region
    $region46: #{strain_to_stress_forward.1} parent=1 // pred_check
      _
    $region47: #{strain_to_stress_forward.1} parent=1 // pred_check_branch
      %85 = sbr.rel (0) target = $region49
    $region48: #{strain_to_stress_forward.1} parent=1 // pred_region
      _
    $region49: #{strain_to_stress_forward.1} parent=1 // pred_fallthru
      _
    // Predicated region
    $region50: #{strain_to_stress_forward.1} parent=1 // pred_check
      _
    $region51: #{strain_to_stress_forward.1} parent=1 // pred_check_branch
      %87 = sbr.rel (0) target = $region53
    $region52: #{strain_to_stress_forward.1} parent=1 // pred_region
      _
    $region53: #{strain_to_stress_forward.1} parent=1 // pred_fallthru
      _
    // Predicated region
    $region54: #{strain_to_stress_forward.1} parent=1 // pred_check
      _
    $region55: #{strain_to_stress_forward.1} parent=1 // pred_check_branch
      %89 = sbr.rel (0) target = $region57
    $region56: #{strain_to_stress_forward.1} parent=1 // pred_region
      %90 = dma.done [#allocation3], 256
    $region57: #{strain_to_stress_forward.1} parent=1 // pred_fallthru
      _
    // Predicated region
    $region58: #{strain_to_stress_forward.1} parent=1 // pred_check
      _
    $region59: #{strain_to_stress_forward.1} parent=1 // pred_check_branch
      %92 = sbr.rel (0) target = $region61
    $region60: #{strain_to_stress_forward.1} parent=1 // pred_region
      %93 = dma.done [#allocation6], 1024
    $region61: #{strain_to_stress_forward.1} parent=1 // pred_fallthru
      _
    // Predicated region
    $region62: #{strain_to_stress_forward.1} parent=1 // pred_check
      _
    $region63: #{strain_to_stress_forward.1} parent=1 // pred_check_branch
      %95 = sbr.rel (0) target = $region65
    $region64: #{strain_to_stress_forward.1} parent=1 // pred_region
      %96 = dma.done [#allocation6], 1024
    $region65: #{strain_to_stress_forward.1} parent=1 // pred_fallthru
      _
    // Predicated region
    $region66: #{strain_to_stress_forward.1} parent=1 // pred_check
      _
    $region67: #{strain_to_stress_forward.1} parent=1 // pred_check_branch
      %98 = sbr.rel (0) target = $region69
    $region68: #{strain_to_stress_forward.1} parent=1 // pred_region
      %99 = dma.done [#allocation9], 1024
    $region69: #{strain_to_stress_forward.1} parent=1 // pred_fallthru
      _
    %v101 = vld [vmem:[#allocation2] sm:$0xff]
    %v102 = vld [vmem:[#allocation2 + $0x8] sm:$0xff]
    %v103 = vpack.c.bf16 %v102, %v101
    %v104 = vld [vmem:[%s1] sm:$0xf]
    %v105 = vld [vmem:[%s1 + $0x4] sm:$0xf]
    %v106 = vld [vmem:[%s1 + $0x8] sm:$0xf]
    %v107 = vld [vmem:[%s1 + $0xc] sm:$0xf]
    %v108 = vld [vmem:[%s1 + $0x10] sm:$0x1]
    %v109 = vld [vmem:[%s2] sm:$0x1]
    %v111 = vlaneseq
    %v112 = vshrl.u32 %v111, 7
    %v113 = vsub.s32 0, %v112
    %v114 = vrot.slane %v109, %v113
    %v121 = vunpack.c.l.b16 %v104
    %v122 = vunpack.c.l.b16 %v105
    %v123 = vunpack.c.l.b16 %v106
    %v124 = vunpack.c.l.b16 %v107
    %v125 = vunpack.c.l.b16 %v108
    %v126 = vpack.c.b16 %v122, %v121
    %v127 = vpack.c.b16 %v124, %v123
    %v128 = vpack.c.b16 %v125, %v125
    %vm131 = vcmask 277504
    %v133 = vsel %vm131, %v103, 0
    %vm135 = vcmask 1040384
    %v137 = vsel %vm135, %v128, 0
    %139 = vmatprep.subr.bf16.mxu0 0
    %140 = vmatpush1.bf16.msra.mxu0 0
    %141 = vmatprep.subr.bf16.mxu0 0
    %142 = vmatpush1.bf16.msra.mxu0 0
    %143 = vmatprep.subr.bf16.mxu0 0
    %144 = vmatpush1.bf16.msra.mxu0 0
    %145 = vmatprep.subr.bf16.mxu0 0
    %146 = vmatpush1.bf16.msra.mxu0 0
    %147 = vmatprep.subr.bf16.mxu0 0
    %148 = vmatpush1.bf16.msra.mxu0 0
    %149 = vmatprep.subr.bf16.mxu0 0
    %150 = vmatpush1.bf16.msra.mxu0 %v137
    %151 = vmatprep.subr.bf16.mxu0 0
    %152 = vmatpush1.bf16.msra.mxu0 %v127
    %153 = vmatprep.subr.bf16.mxu0 0
    %154 = vmatpush1.bf16.msra.mxu0 %v126
    %155 = vmatprep.subr.bf16.mxu0 0
    %156 = vmatpush2.bf16.msra.mxu0 0
    %157 = vmatprep.subr.bf16.mxu0 0
    %158 = vmatpush2.bf16.msra.mxu0 0
    %159 = vmatprep.subr.bf16.mxu0 0
    %160 = vmatpush2.bf16.msra.mxu0 0
    %161 = vmatprep.subr.bf16.mxu0 0
    %162 = vmatpush2.bf16.msra.mxu0 0
    %163 = vmatprep.subr.bf16.mxu0 0
    %164 = vmatpush2.bf16.msra.mxu0 0
    %165 = vmatprep.subr.bf16.mxu0 0
    %166 = vmatpush2.bf16.msra.mxu0 0
    %167 = vmatprep.subr.bf16.mxu0 0
    %168 = vmatpush2.bf16.msra.mxu0 0
    %169 = vmatprep.subr.bf16.mxu0 0
    %170 = vmatpush2.bf16.msra.mxu0 0
    %171 = vmatprep.mubr.bf16.mxu0 0
    %172 = vmatmul.mubr.bf16.gmra.mxu0 %v133
    %v173 = vpop.f32.mrf.mxu0
    %v174 = vadd.f32 %v114, %v173
    %v175 = vpop.f32.mrf.mxu0
    %v176 = vpop.f32.mrf.mxu0
    %v177 = vadd.f32 %v114, %v176
    %v178 = vpop.f32.mrf.mxu0
    %179 = vdwg.mxu0
    %v180 = vmax.f32 %v174, 0.0
    %v181 = vmax.f32 %v177, 0.0
    %v182 = vpack.c.bf16 %v181, %v180
    %v183 = vld [vmem:[%s3] sm:$0xf]
    %v184 = vld [vmem:[%s3 + $0x4] sm:$0xf]
    %v185 = vld [vmem:[%s3 + $0x8] sm:$0xf]
    %v186 = vld [vmem:[%s3 + $0xc] sm:$0xf]
    %v187 = vld [vmem:[%s3 + $0x10] sm:$0xf]
    %v188 = vld [vmem:[%s3 + $0x14] sm:$0xf]
    %v189 = vld [vmem:[%s3 + $0x18] sm:$0xf]
    %v190 = vld [vmem:[%s3 + $0x1c] sm:$0xf]
    %v191 = vld [vmem:[%s3 + $0x20] sm:$0xf]
    %v192 = vld [vmem:[%s3 + $0x24] sm:$0xf]
    %v193 = vld [vmem:[%s3 + $0x28] sm:$0xf]
    %v194 = vld [vmem:[%s3 + $0x2c] sm:$0xf]
    %v195 = vld [vmem:[%s3 + $0x30] sm:$0xf]
    %v196 = vld [vmem:[%s3 + $0x34] sm:$0xf]
    %v197 = vld [vmem:[%s3 + $0x38] sm:$0xf]
    %v198 = vld [vmem:[%s3 + $0x3c] sm:$0xf]
    %v199 = vld [vmem:[%s4] sm:$0x1]
    %v201 = vlaneseq
    %v202 = vshrl.u32 %v201, 7
    %v203 = vsub.s32 0, %v202
    %v204 = vrot.slane %v199, %v203
    %v222 = vunpack.c.l.b16 %v183
    %v223 = vunpack.c.l.b16 %v184
    %v224 = vunpack.c.l.b16 %v185
    %v225 = vunpack.c.l.b16 %v186
    %v226 = vunpack.c.l.b16 %v187
    %v227 = vunpack.c.l.b16 %v188
    %v228 = vunpack.c.l.b16 %v189
    %v229 = vunpack.c.l.b16 %v190
    %v230 = vunpack.c.l.b16 %v191
    %v231 = vunpack.c.l.b16 %v192
    %v232 = vunpack.c.l.b16 %v193
    %v233 = vunpack.c.l.b16 %v194
    %v234 = vunpack.c.l.b16 %v195
    %v235 = vunpack.c.l.b16 %v196
    %v236 = vunpack.c.l.b16 %v197
    %v237 = vunpack.c.l.b16 %v198
    %v238 = vpack.c.b16 %v223, %v222
    %v239 = vpack.c.b16 %v225, %v224
    %v240 = vpack.c.b16 %v227, %v226
    %v241 = vpack.c.b16 %v229, %v228
    %v242 = vpack.c.b16 %v231, %v230
    %v243 = vpack.c.b16 %v233, %v232
    %v244 = vpack.c.b16 %v235, %v234
    %v245 = vpack.c.b16 %v237, %v236
    %254 = vmatprep.subr.bf16.mxu0 0
    %255 = vmatpush1.bf16.msra.mxu0 %v245
    %256 = vmatprep.subr.bf16.mxu0 0
    %257 = vmatpush1.bf16.msra.mxu0 %v244
    %258 = vmatprep.subr.bf16.mxu0 0
    %259 = vmatpush1.bf16.msra.mxu0 %v243
    %260 = vmatprep.subr.bf16.mxu0 0
    %261 = vmatpush1.bf16.msra.mxu0 %v242
    %262 = vmatprep.subr.bf16.mxu0 0
    %263 = vmatpush1.bf16.msra.mxu0 %v241
    %264 = vmatprep.subr.bf16.mxu0 0
    %265 = vmatpush1.bf16.msra.mxu0 %v240
    %266 = vmatprep.subr.bf16.mxu0 0
    %267 = vmatpush1.bf16.msra.mxu0 %v239
    %268 = vmatprep.subr.bf16.mxu0 0
    %269 = vmatpush1.bf16.msra.mxu0 %v238
    %270 = vmatprep.subr.bf16.mxu0 0
    %271 = vmatpush2.bf16.msra.mxu0 0
    %272 = vmatprep.subr.bf16.mxu0 0
    %273 = vmatpush2.bf16.msra.mxu0 0
    %274 = vmatprep.subr.bf16.mxu0 0
    %275 = vmatpush2.bf16.msra.mxu0 0
    %276 = vmatprep.subr.bf16.mxu0 0
    %277 = vmatpush2.bf16.msra.mxu0 0
    %278 = vmatprep.subr.bf16.mxu0 0
    %279 = vmatpush2.bf16.msra.mxu0 0
    %280 = vmatprep.subr.bf16.mxu0 0
    %281 = vmatpush2.bf16.msra.mxu0 0
    %282 = vmatprep.subr.bf16.mxu0 0
    %283 = vmatpush2.bf16.msra.mxu0 0
    %284 = vmatprep.subr.bf16.mxu0 0
    %285 = vmatpush2.bf16.msra.mxu0 0
    %286 = vmatprep.mubr.bf16.mxu0 0
    %287 = vmatmul.mubr.bf16.gmra.mxu0 %v182
    %v288 = vpop.f32.mrf.mxu0
    %v289 = vadd.f32 %v204, %v288
    %v290 = vpop.f32.mrf.mxu0
    %v291 = vpop.f32.mrf.mxu0
    %v292 = vadd.f32 %v204, %v291
    %v293 = vpop.f32.mrf.mxu0
    %294 = vdwg.mxu0
    %v295 = vmax.f32 %v289, 0.0
    %v296 = vmax.f32 %v292, 0.0
    %v297 = vpack.c.bf16 %v296, %v295
    %v298 = vld [vmem:[#allocation5] sm:$0xf]
    %v299 = vld [vmem:[#allocation5 + $0x4] sm:$0xf]
    %v300 = vld [vmem:[#allocation5 + $0x8] sm:$0xf]
    %v301 = vld [vmem:[#allocation5 + $0xc] sm:$0xf]
    %v302 = vld [vmem:[#allocation5 + $0x10] sm:$0xf]
    %v303 = vld [vmem:[#allocation5 + $0x14] sm:$0xf]
    %v304 = vld [vmem:[#allocation5 + $0x18] sm:$0xf]
    %v305 = vld [vmem:[#allocation5 + $0x1c] sm:$0xf]
    %v306 = vld [vmem:[#allocation5 + $0x20] sm:$0xf]
    %v307 = vld [vmem:[#allocation5 + $0x24] sm:$0xf]
    %v308 = vld [vmem:[#allocation5 + $0x28] sm:$0xf]
    %v309 = vld [vmem:[#allocation5 + $0x2c] sm:$0xf]
    %v310 = vld [vmem:[#allocation5 + $0x30] sm:$0xf]
    %v311 = vld [vmem:[#allocation5 + $0x34] sm:$0xf]
    %v312 = vld [vmem:[#allocation5 + $0x38] sm:$0xf]
    %v313 = vld [vmem:[#allocation5 + $0x3c] sm:$0xf]
    %v314 = vld [vmem:[%s6] sm:$0x1]
    %v316 = vlaneseq
    %v317 = vshrl.u32 %v316, 7
    %v318 = vsub.s32 0, %v317
    %v319 = vrot.slane %v314, %v318
    %v337 = vunpack.c.l.b16 %v298
    %v338 = vunpack.c.l.b16 %v299
    %v339 = vunpack.c.l.b16 %v300
    %v340 = vunpack.c.l.b16 %v301
    %v341 = vunpack.c.l.b16 %v302
    %v342 = vunpack.c.l.b16 %v303
    %v343 = vunpack.c.l.b16 %v304
    %v344 = vunpack.c.l.b16 %v305
    %v345 = vunpack.c.l.b16 %v306
    %v346 = vunpack.c.l.b16 %v307
    %v347 = vunpack.c.l.b16 %v308
    %v348 = vunpack.c.l.b16 %v309
    %v349 = vunpack.c.l.b16 %v310
    %v350 = vunpack.c.l.b16 %v311
    %v351 = vunpack.c.l.b16 %v312
    %v352 = vunpack.c.l.b16 %v313
    %v353 = vpack.c.b16 %v338, %v337
    %v354 = vpack.c.b16 %v340, %v339
    %v355 = vpack.c.b16 %v342, %v341
    %v356 = vpack.c.b16 %v344, %v343
    %v357 = vpack.c.b16 %v346, %v345
    %v358 = vpack.c.b16 %v348, %v347
    %v359 = vpack.c.b16 %v350, %v349
    %v360 = vpack.c.b16 %v352, %v351
    %369 = vmatprep.subr.bf16.mxu0 0
    %370 = vmatpush1.bf16.msra.mxu0 %v360
    %371 = vmatprep.subr.bf16.mxu0 0
    %372 = vmatpush1.bf16.msra.mxu0 %v359
    %373 = vmatprep.subr.bf16.mxu0 0
    %374 = vmatpush1.bf16.msra.mxu0 %v358
    %375 = vmatprep.subr.bf16.mxu0 0
    %376 = vmatpush1.bf16.msra.mxu0 %v357
    %377 = vmatprep.subr.bf16.mxu0 0
    %378 = vmatpush1.bf16.msra.mxu0 %v356
    %379 = vmatprep.subr.bf16.mxu0 0
    %380 = vmatpush1.bf16.msra.mxu0 %v355
    %381 = vmatprep.subr.bf16.mxu0 0
    %382 = vmatpush1.bf16.msra.mxu0 %v354
    %383 = vmatprep.subr.bf16.mxu0 0
    %384 = vmatpush1.bf16.msra.mxu0 %v353
    %385 = vmatprep.subr.bf16.mxu0 0
    %386 = vmatpush2.bf16.msra.mxu0 0
    %387 = vmatprep.subr.bf16.mxu0 0
    %388 = vmatpush2.bf16.msra.mxu0 0
    %389 = vmatprep.subr.bf16.mxu0 0
    %390 = vmatpush2.bf16.msra.mxu0 0
    %391 = vmatprep.subr.bf16.mxu0 0
    %392 = vmatpush2.bf16.msra.mxu0 0
    %393 = vmatprep.subr.bf16.mxu0 0
    %394 = vmatpush2.bf16.msra.mxu0 0
    %395 = vmatprep.subr.bf16.mxu0 0
    %396 = vmatpush2.bf16.msra.mxu0 0
    %397 = vmatprep.subr.bf16.mxu0 0
    %398 = vmatpush2.bf16.msra.mxu0 0
    %399 = vmatprep.subr.bf16.mxu0 0
    %400 = vmatpush2.bf16.msra.mxu0 0
    %401 = vmatprep.mubr.bf16.mxu0 0
    %402 = vmatmul.mubr.bf16.gmra.mxu0 %v297
    %v403 = vpop.f32.mrf.mxu0
    %v404 = vadd.f32 %v319, %v403
    %v405 = vpop.f32.mrf.mxu0
    %v406 = vpop.f32.mrf.mxu0
    %v407 = vadd.f32 %v319, %v406
    %v408 = vpop.f32.mrf.mxu0
    %409 = vdwg.mxu0
    %v410 = vmax.f32 %v404, 0.0
    %v411 = vmax.f32 %v407, 0.0
    %v412 = vpack.c.bf16 %v411, %v410
    %v413 = vld [vmem:[#allocation7] sm:$0xf]
    %v414 = vld [vmem:[#allocation7 + $0x4] sm:$0xf]
    %v415 = vld [vmem:[#allocation7 + $0x8] sm:$0xf]
    %v416 = vld [vmem:[#allocation7 + $0xc] sm:$0xf]
    %v417 = vld [vmem:[#allocation7 + $0x10] sm:$0xf]
    %v418 = vld [vmem:[#allocation7 + $0x14] sm:$0xf]
    %v419 = vld [vmem:[#allocation7 + $0x18] sm:$0xf]
    %v420 = vld [vmem:[#allocation7 + $0x1c] sm:$0xf]
    %v421 = vld [vmem:[#allocation7 + $0x20] sm:$0xf]
    %v422 = vld [vmem:[#allocation7 + $0x24] sm:$0xf]
    %v423 = vld [vmem:[#allocation7 + $0x28] sm:$0xf]
    %v424 = vld [vmem:[#allocation7 + $0x2c] sm:$0xf]
    %v425 = vld [vmem:[#allocation7 + $0x30] sm:$0xf]
    %v426 = vld [vmem:[#allocation7 + $0x34] sm:$0xf]
    %v427 = vld [vmem:[#allocation7 + $0x38] sm:$0xf]
    %v428 = vld [vmem:[#allocation7 + $0x3c] sm:$0xf]
    %v429 = vld [vmem:[%s8] sm:$0x1]
    %v431 = vlaneseq
    %v432 = vshrl.u32 %v431, 7
    %v433 = vsub.s32 0, %v432
    %v434 = vrot.slane %v429, %v433
    %v452 = vunpack.c.l.b16 %v413
    %v453 = vunpack.c.l.b16 %v414
    %v454 = vunpack.c.l.b16 %v415
    %v455 = vunpack.c.l.b16 %v416
    %v456 = vunpack.c.l.b16 %v417
    %v457 = vunpack.c.l.b16 %v418
    %v458 = vunpack.c.l.b16 %v419
    %v459 = vunpack.c.l.b16 %v420
    %v460 = vunpack.c.l.b16 %v421
    %v461 = vunpack.c.l.b16 %v422
    %v462 = vunpack.c.l.b16 %v423
    %v463 = vunpack.c.l.b16 %v424
    %v464 = vunpack.c.l.b16 %v425
    %v465 = vunpack.c.l.b16 %v426
    %v466 = vunpack.c.l.b16 %v427
    %v467 = vunpack.c.l.b16 %v428
    %v468 = vpack.c.b16 %v453, %v452
    %v469 = vpack.c.b16 %v455, %v454
    %v470 = vpack.c.b16 %v457, %v456
    %v471 = vpack.c.b16 %v459, %v458
    %v472 = vpack.c.b16 %v461, %v460
    %v473 = vpack.c.b16 %v463, %v462
    %v474 = vpack.c.b16 %v465, %v464
    %v475 = vpack.c.b16 %v467, %v466
    %484 = vmatprep.subr.bf16.mxu0 0
    %485 = vmatpush1.bf16.msra.mxu0 %v475
    %486 = vmatprep.subr.bf16.mxu0 0
    %487 = vmatpush1.bf16.msra.mxu0 %v474
    %488 = vmatprep.subr.bf16.mxu0 0
    %489 = vmatpush1.bf16.msra.mxu0 %v473
    %490 = vmatprep.subr.bf16.mxu0 0
    %491 = vmatpush1.bf16.msra.mxu0 %v472
    %492 = vmatprep.subr.bf16.mxu0 0
    %493 = vmatpush1.bf16.msra.mxu0 %v471
    %494 = vmatprep.subr.bf16.mxu0 0
    %495 = vmatpush1.bf16.msra.mxu0 %v470
    %496 = vmatprep.subr.bf16.mxu0 0
    %497 = vmatpush1.bf16.msra.mxu0 %v469
    %498 = vmatprep.subr.bf16.mxu0 0
    %499 = vmatpush1.bf16.msra.mxu0 %v468
    %500 = vmatprep.subr.bf16.mxu0 0
    %501 = vmatpush2.bf16.msra.mxu0 0
    %502 = vmatprep.subr.bf16.mxu0 0
    %503 = vmatpush2.bf16.msra.mxu0 0
    %504 = vmatprep.subr.bf16.mxu0 0
    %505 = vmatpush2.bf16.msra.mxu0 0
    %506 = vmatprep.subr.bf16.mxu0 0
    %507 = vmatpush2.bf16.msra.mxu0 0
    %508 = vmatprep.subr.bf16.mxu0 0
    %509 = vmatpush2.bf16.msra.mxu0 0
    %510 = vmatprep.subr.bf16.mxu0 0
    %511 = vmatpush2.bf16.msra.mxu0 0
    %512 = vmatprep.subr.bf16.mxu0 0
    %513 = vmatpush2.bf16.msra.mxu0 0
    %514 = vmatprep.subr.bf16.mxu0 0
    %515 = vmatpush2.bf16.msra.mxu0 0
    %516 = vmatprep.mubr.bf16.mxu0 0
    %517 = vmatmul.mubr.bf16.gmra.mxu0 %v412
    %v518 = vpop.f32.mrf.mxu0
    %v519 = vadd.f32 %v434, %v518
    %v520 = vpop.f32.mrf.mxu0
    %v521 = vpop.f32.mrf.mxu0
    %v522 = vadd.f32 %v434, %v521
    %v523 = vpop.f32.mrf.mxu0
    %524 = vdwg.mxu0
    %v525 = vmax.f32 %v519, 0.0
    %v526 = vmax.f32 %v522, 0.0
    %v527 = vpack.c.bf16 %v526, %v525
    %v528 = vld [vmem:[#allocation8] sm:$0xf]
    %v529 = vld [vmem:[#allocation8 + $0x4] sm:$0xf]
    %v530 = vld [vmem:[#allocation8 + $0x8] sm:$0xf]
    %v531 = vld [vmem:[#allocation8 + $0xc] sm:$0xf]
    %v532 = vld [vmem:[#allocation8 + $0x10] sm:$0xf]
    %v533 = vld [vmem:[#allocation8 + $0x14] sm:$0xf]
    %v534 = vld [vmem:[#allocation8 + $0x18] sm:$0xf]
    %v535 = vld [vmem:[#allocation8 + $0x1c] sm:$0xf]
    %v536 = vld [vmem:[#allocation8 + $0x20] sm:$0xf]
    %v537 = vld [vmem:[#allocation8 + $0x24] sm:$0xf]
    %v538 = vld [vmem:[#allocation8 + $0x28] sm:$0xf]
    %v539 = vld [vmem:[#allocation8 + $0x2c] sm:$0xf]
    %v540 = vld [vmem:[#allocation8 + $0x30] sm:$0xf]
    %v541 = vld [vmem:[#allocation8 + $0x34] sm:$0xf]
    %v542 = vld [vmem:[#allocation8 + $0x38] sm:$0xf]
    %v543 = vld [vmem:[#allocation8 + $0x3c] sm:$0xf]
    %v544 = vld [vmem:[%s10] sm:$0x1]
    %v546 = vlaneseq
    %v547 = vshrl.u32 %v546, 7
    %v548 = vsub.s32 0, %v547
    %v549 = vrot.slane %v544, %v548
    %v567 = vunpack.c.l.b16 %v528
    %v568 = vunpack.c.l.b16 %v529
    %v569 = vunpack.c.l.b16 %v530
    %v570 = vunpack.c.l.b16 %v531
    %v571 = vunpack.c.l.b16 %v532
    %v572 = vunpack.c.l.b16 %v533
    %v573 = vunpack.c.l.b16 %v534
    %v574 = vunpack.c.l.b16 %v535
    %v575 = vunpack.c.l.b16 %v536
    %v576 = vunpack.c.l.b16 %v537
    %v577 = vunpack.c.l.b16 %v538
    %v578 = vunpack.c.l.b16 %v539
    %v579 = vunpack.c.l.b16 %v540
    %v580 = vunpack.c.l.b16 %v541
    %v581 = vunpack.c.l.b16 %v542
    %v582 = vunpack.c.l.b16 %v543
    %v583 = vpack.c.b16 %v568, %v567
    %v584 = vpack.c.b16 %v570, %v569
    %v585 = vpack.c.b16 %v572, %v571
    %v586 = vpack.c.b16 %v574, %v573
    %v587 = vpack.c.b16 %v576, %v575
    %v588 = vpack.c.b16 %v578, %v577
    %v589 = vpack.c.b16 %v580, %v579
    %v590 = vpack.c.b16 %v582, %v581
    %599 = vmatprep.subr.bf16.mxu0 0
    %600 = vmatpush1.bf16.msra.mxu0 %v590
    %601 = vmatprep.subr.bf16.mxu0 0
    %602 = vmatpush1.bf16.msra.mxu0 %v589
    %603 = vmatprep.subr.bf16.mxu0 0
    %604 = vmatpush1.bf16.msra.mxu0 %v588
    %605 = vmatprep.subr.bf16.mxu0 0
    %606 = vmatpush1.bf16.msra.mxu0 %v587
    %607 = vmatprep.subr.bf16.mxu0 0
    %608 = vmatpush1.bf16.msra.mxu0 %v586
    %609 = vmatprep.subr.bf16.mxu0 0
    %610 = vmatpush1.bf16.msra.mxu0 %v585
    %611 = vmatprep.subr.bf16.mxu0 0
    %612 = vmatpush1.bf16.msra.mxu0 %v584
    %613 = vmatprep.subr.bf16.mxu0 0
    %614 = vmatpush1.bf16.msra.mxu0 %v583
    %615 = vmatprep.subr.bf16.mxu0 0
    %616 = vmatpush2.bf16.msra.mxu0 0
    %617 = vmatprep.subr.bf16.mxu0 0
    %618 = vmatpush2.bf16.msra.mxu0 0
    %619 = vmatprep.subr.bf16.mxu0 0
    %620 = vmatpush2.bf16.msra.mxu0 0
    %621 = vmatprep.subr.bf16.mxu0 0
    %622 = vmatpush2.bf16.msra.mxu0 0
    %623 = vmatprep.subr.bf16.mxu0 0
    %624 = vmatpush2.bf16.msra.mxu0 0
    %625 = vmatprep.subr.bf16.mxu0 0
    %626 = vmatpush2.bf16.msra.mxu0 0
    %627 = vmatprep.subr.bf16.mxu0 0
    %628 = vmatpush2.bf16.msra.mxu0 0
    %629 = vmatprep.subr.bf16.mxu0 0
    %630 = vmatpush2.bf16.msra.mxu0 0
    %631 = vmatprep.mubr.bf16.mxu0 0
    %632 = vmatmul.mubr.bf16.gmra.mxu0 %v527
    %v633 = vpop.f32.mrf.mxu0
    %v634 = vadd.f32 %v549, %v633
    %v635 = vpop.f32.mrf.mxu0
    %v636 = vpop.f32.mrf.mxu0
    %v637 = vadd.f32 %v549, %v636
    %v638 = vpop.f32.mrf.mxu0
    %639 = vdwg.mxu0
    %v640 = vmax.f32 %v634, 0.0
    %v641 = vmax.f32 %v637, 0.0
    %v642 = vpack.c.bf16 %v641, %v640
    %v643 = vld [vmem:[%s11] sm:$0xf]
    %v644 = vld [vmem:[%s11 + $0x4] sm:$0xf]
    %v645 = vld [vmem:[%s11 + $0x8] sm:$0xf]
    %v646 = vld [vmem:[%s11 + $0xc] sm:$0xf]
    %v647 = vld [vmem:[%s11 + $0x10] sm:$0xf]
    %v648 = vld [vmem:[%s11 + $0x14] sm:$0xf]
    %v649 = vld [vmem:[%s11 + $0x18] sm:$0xf]
    %v650 = vld [vmem:[%s11 + $0x1c] sm:$0xf]
    %v651 = vld [vmem:[%s11 + $0x20] sm:$0xf]
    %v652 = vld [vmem:[%s11 + $0x24] sm:$0xf]
    %v653 = vld [vmem:[%s11 + $0x28] sm:$0xf]
    %v654 = vld [vmem:[%s11 + $0x2c] sm:$0xf]
    %v655 = vld [vmem:[%s11 + $0x30] sm:$0xf]
    %v656 = vld [vmem:[%s11 + $0x34] sm:$0xf]
    %v657 = vld [vmem:[%s11 + $0x38] sm:$0xf]
    %v658 = vld [vmem:[%s11 + $0x3c] sm:$0xf]
    %v659 = vld [vmem:[%s12] sm:$0x1]
    %v661 = vlaneseq
    %v662 = vshrl.u32 %v661, 7
    %v663 = vsub.s32 0, %v662
    %v664 = vrot.slane %v659, %v663
    %v682 = vunpack.c.l.b16 %v643
    %v683 = vunpack.c.l.b16 %v644
    %v684 = vunpack.c.l.b16 %v645
    %v685 = vunpack.c.l.b16 %v646
    %v686 = vunpack.c.l.b16 %v647
    %v687 = vunpack.c.l.b16 %v648
    %v688 = vunpack.c.l.b16 %v649
    %v689 = vunpack.c.l.b16 %v650
    %v690 = vunpack.c.l.b16 %v651
    %v691 = vunpack.c.l.b16 %v652
    %v692 = vunpack.c.l.b16 %v653
    %v693 = vunpack.c.l.b16 %v654
    %v694 = vunpack.c.l.b16 %v655
    %v695 = vunpack.c.l.b16 %v656
    %v696 = vunpack.c.l.b16 %v657
    %v697 = vunpack.c.l.b16 %v658
    %v698 = vpack.c.b16 %v683, %v682
    %v699 = vpack.c.b16 %v685, %v684
    %v700 = vpack.c.b16 %v687, %v686
    %v701 = vpack.c.b16 %v689, %v688
    %v702 = vpack.c.b16 %v691, %v690
    %v703 = vpack.c.b16 %v693, %v692
    %v704 = vpack.c.b16 %v695, %v694
    %v705 = vpack.c.b16 %v697, %v696
    %714 = vmatprep.subr.bf16.mxu0 0
    %715 = vmatpush1.bf16.msra.mxu0 %v705
    %716 = vmatprep.subr.bf16.mxu0 0
    %717 = vmatpush1.bf16.msra.mxu0 %v704
    %718 = vmatprep.subr.bf16.mxu0 0
    %719 = vmatpush1.bf16.msra.mxu0 %v703
    %720 = vmatprep.subr.bf16.mxu0 0
    %721 = vmatpush1.bf16.msra.mxu0 %v702
    %722 = vmatprep.subr.bf16.mxu0 0
    %723 = vmatpush1.bf16.msra.mxu0 %v701
    %724 = vmatprep.subr.bf16.mxu0 0
    %725 = vmatpush1.bf16.msra.mxu0 %v700
    %726 = vmatprep.subr.bf16.mxu0 0
    %727 = vmatpush1.bf16.msra.mxu0 %v699
    %728 = vmatprep.subr.bf16.mxu0 0
    %729 = vmatpush1.bf16.msra.mxu0 %v698
    %730 = vmatprep.subr.bf16.mxu0 0
    %731 = vmatpush2.bf16.msra.mxu0 0
    %732 = vmatprep.subr.bf16.mxu0 0
    %733 = vmatpush2.bf16.msra.mxu0 0
    %734 = vmatprep.subr.bf16.mxu0 0
    %735 = vmatpush2.bf16.msra.mxu0 0
    %736 = vmatprep.subr.bf16.mxu0 0
    %737 = vmatpush2.bf16.msra.mxu0 0
    %738 = vmatprep.subr.bf16.mxu0 0
    %739 = vmatpush2.bf16.msra.mxu0 0
    %740 = vmatprep.subr.bf16.mxu0 0
    %741 = vmatpush2.bf16.msra.mxu0 0
    %742 = vmatprep.subr.bf16.mxu0 0
    %743 = vmatpush2.bf16.msra.mxu0 0
    %744 = vmatprep.subr.bf16.mxu0 0
    %745 = vmatpush2.bf16.msra.mxu0 0
    %746 = vmatprep.mubr.bf16.mxu0 0
    %747 = vmatmul.mubr.bf16.gmra.mxu0 %v642
    %v748 = vpop.f32.mrf.mxu0
    %v749 = vadd.f32 %v664, %v748
    %v750 = vpop.f32.mrf.mxu0
    %v751 = vpop.f32.mrf.mxu0
    %v752 = vadd.f32 %v664, %v751
    %v753 = vpop.f32.mrf.mxu0
    %754 = vdwg.mxu0
    %vm755 = vcmask 392192
    %756 = vst.msk [vmem:[#allocation10] sm:$0xff] %vm755, %v749
    %757 = vst.msk [vmem:[#allocation10 + $0x8] sm:$0xff] %vm755, %v752
    // Predicated region
    $region70: #{strain_to_stress_forward.1} parent=1 // pred_check
      _
    $region71: #{strain_to_stress_forward.1} parent=1 // pred_check_branch
      %759 = sbr.rel (0) target = $region73
    $region72: #{strain_to_stress_forward.1} parent=1 // pred_region
      %s761 = ssub.s32 256, 256
      %762 = vsyncadd [#allocation4], %s761
      %s763 = sshll.u32 [#allocation10], 4
      %s764 = int_to_ptr.vmem [resolvable:$true] %s763
      %769 = dma.vmem_to_hbm [thread:$0]  %s764, 256, %s13, [#allocation4], 128, 128, 8
    $region73: #{strain_to_stress_forward.1} parent=1 // pred_fallthru
      _
    // Predicated region
    $region74: #{strain_to_stress_forward.1} parent=1 // pred_check
      _
    $region75: #{strain_to_stress_forward.1} parent=1 // pred_check_branch
      %771 = sbr.rel (0) target = $region77
    $region76: #{strain_to_stress_forward.1} parent=1 // pred_region
      %772 = dma.done [#allocation4], 256
    $region77: #{strain_to_stress_forward.1} parent=1 // pred_fallthru
      _
    %773 = vsyncpa [#allocation3], 1
    %774 = vsyncpa [#allocation6], 1
    %775 = vsyncpa [#allocation9], 1
    %776 = vsyncpa [#allocation4], 1

</llo_original>
